<compile_context>
chip_gen: v7x
topology: tpu7x:2x2x1
jax: 0.10.0
libtpu: 0.0.40
codegen_flags: <defaults>
</compile_context>

<pallas_src>
import math
from functools import partial

import jax
import jax.numpy as jnp
from jax.experimental import pallas as pl
from jax.experimental.pallas import tpu as pltpu

LANE = 128      # vreg lane count (last-dim alignment)
SUBLANE = 8     # f32 sublane count (second-to-last-dim alignment)


def _round_up(n, m):
    return ((n + m - 1) // m) * m


# ----------------------------------------------------------------------------
# Kernel: 5 matmuls + 4 ReLUs on one (TB, D) activation tile.
# ----------------------------------------------------------------------------
def dqn_kernel(x_ref,
               w1_ref, b1_ref,
               w2_ref, b2_ref,
               w3_ref, b3_ref,
               w4_ref, b4_ref,
               w5_ref, b5_ref,
               out_ref):
    h = x_ref[...]                                                # bf16 (TB, D0p)

    h = jnp.dot(h, w1_ref[...], preferred_element_type=jnp.float32) + b1_ref[...]
    h = jnp.maximum(h, 0.0).astype(jnp.bfloat16)

    h = jnp.dot(h, w2_ref[...], preferred_element_type=jnp.float32) + b2_ref[...]
    h = jnp.maximum(h, 0.0).astype(jnp.bfloat16)

    h = jnp.dot(h, w3_ref[...], preferred_element_type=jnp.float32) + b3_ref[...]
    h = jnp.maximum(h, 0.0).astype(jnp.bfloat16)

    h = jnp.dot(h, w4_ref[...], preferred_element_type=jnp.float32) + b4_ref[...]
    h = jnp.maximum(h, 0.0).astype(jnp.bfloat16)

    y = jnp.dot(h, w5_ref[...], preferred_element_type=jnp.float32) + b5_ref[...]
    out_ref[...] = y.astype(out_ref.dtype)


# ----------------------------------------------------------------------------
# Parameters (PyTorch-style init) + lane padding / bf16 cast.
# ----------------------------------------------------------------------------
def init_linear(key, fan_in, fan_out):
    """U(-1/sqrt(fan_in), 1/sqrt(fan_in)); weight stored as (fan_in, fan_out)."""
    bound = 1.0 / math.sqrt(fan_in)
    kw, kb = jax.random.split(key)
    w = jax.random.uniform(kw, (fan_in, fan_out), jnp.float32, -bound, bound)
    b = jax.random.uniform(kb, (1, fan_out), jnp.float32, -bound, bound)
    return w, b


def make_dqn_params(key, observation_size, action_size,
                    H1=200, H2=160, H3=120, H4=60):
    dims = [observation_size, H1, H2, H3, H4, action_size]
    keys = jax.random.split(key, len(dims) - 1)
    return [init_linear(k, dims[i], dims[i + 1]) for i, k in enumerate(keys)]


def pad_dqn_params(params):
    """Zero-pad every in/out dim to a 128 multiple; weights -> bf16, biases f32.

    Zero padding is exact: padded input lanes hit zero weight rows, padded
    output lanes get zero weight columns + zero bias, so ReLU keeps them at 0
    and they contribute nothing downstream.
    """
    padded = []
    for w, b in params:
        kp = _round_up(w.shape[0], LANE)
        npad = _round_up(w.shape[1], LANE)
        wp = jnp.zeros((kp, npad), jnp.bfloat16)
        wp = wp.at[:w.shape[0], :w.shape[1]].set(w.astype(jnp.bfloat16))
        bp = jnp.zeros((1, npad), jnp.float32)
        bp = bp.at[:, :b.shape[1]].set(b)
        padded.append((wp, bp))
    return padded


# ----------------------------------------------------------------------------
# Host wrapper (jit-compiled; action_size / tile size are static).
# ----------------------------------------------------------------------------
@partial(jax.jit, static_argnames=("action_size", "tb"))
def dqn_forward(x, padded_params, action_size, *, tb=512):
    """Run the fused DQN forward. `padded_params` from pad_dqn_params()."""
    (w1, b1), (w2, b2), (w3, b3), (w4, b4), (w5, b5) = padded_params
    batch, obs = x.shape
    d0p = w1.shape[0]
    ap = w5.shape[1]

    # Pad batch to a sublane multiple, then to a whole number of TB-row tiles.
    bp = _round_up(max(batch, SUBLANE), SUBLANE)
    tb_eff = min(tb, bp)
    bp = _round_up(bp, tb_eff)

    xp = jnp.zeros((bp, d0p), jnp.bfloat16)
    xp = xp.at[:batch, :obs].set(x.astype(jnp.bfloat16))

    weights_and_biases = (w1, b1, w2, b2, w3, b3, w4, b4, w5, b5)

    def const_spec(a):
        # Full-array block, same block index every grid step -> parameters
        # stay VMEM-resident across iterations (no re-DMA).
        return pl.BlockSpec(a.shape, lambda i: (0,) * a.ndim)

    flops = 2 * bp * sum(int(w.shape[0]) * int(w.shape[1])
                         for w in (w1, w2, w3, w4, w5))
    bytes_accessed = (
        xp.size * 2                                     # bf16 activations in
        + bp * ap * 4                                   # f32 Q-values out
        + sum(w.size * 2 + b.size * 4 for w, b in padded_params))

    out_p = pl.pallas_call(
        dqn_kernel,
        out_shape=jax.ShapeDtypeStruct((bp, ap), jnp.float32),
        grid=(bp // tb_eff,),
        in_specs=[pl.BlockSpec((tb_eff, d0p), lambda i: (i, 0))]
                 + [const_spec(a) for a in weights_and_biases],
        out_specs=pl.BlockSpec((tb_eff, ap), lambda i: (i, 0)),
        compiler_params=pltpu.CompilerParams(
            dimension_semantics=("parallel",),
            vmem_limit_bytes=32 * 1024 * 1024),
        cost_estimate=pl.CostEstimate(
            flops=flops, transcendentals=0, bytes_accessed=bytes_accessed),
    )(xp, *weights_and_biases)

    return out_p[:batch, :action_size]


# ----------------------------------------------------------------------------
# References for correctness checks.
# ----------------------------------------------------------------------------
def dqn_reference_f32(x, params):
    h = x
    for i, (w, b) in enumerate(params):
        h = h @ w + b
        if i < len(params) - 1:
            h = jnp.maximum(h, 0.0)
    return h


def dqn_reference_bf16(x, padded_params, action_size, obs):
    """Pure-JAX replica of the kernel's mixed-precision math."""
    d0p = padded_params[0][0].shape[0]
    h = jnp.zeros((x.shape[0], d0p), jnp.bfloat16).at[:, :obs].set(
        x.astype(jnp.bfloat16))
    n = len(padded_params)
    for i, (w, b) in enumerate(padded_params):
        h = jnp.dot(h, w, preferred_element_type=jnp.float32) + b
        if i < n - 1:
            h = jnp.maximum(h, 0.0).astype(jnp.bfloat16)
    return h[:, :action_size]


if __name__ == "__main__":
    key = jax.random.PRNGKey(0)
    k_params, k_obs, k_obs2 = jax.random.split(key, 3)

    observation_size = 64     # belief vector size
    action_size = 52          # one output per card in the deck

    params = make_dqn_params(k_params, observation_size, action_size)
    padded_params = pad_dqn_params(params)

    # Small inference-style batch.
    batch = 4
    x = jax.random.normal(k_obs, (batch, observation_size), jnp.float32)
    out = jax.block_until_ready(dqn_forward(x, padded_params, action_size))
    assert out.shape == (batch, action_size)

    ref_bf16 = dqn_reference_bf16(x, padded_params, action_size, observation_size)
    ref_f32 = dqn_reference_f32(x, params)
    assert jnp.allclose(out, ref_bf16, atol=2e-3, rtol=2e-3)
    assert jnp.allclose(out, ref_f32, atol=5e-2, rtol=5e-2)

    # Larger, non-multiple batch: exercises batch padding (304 rows, 1 tile).
    batch2 = 300
    x2 = jax.random.normal(k_obs2, (batch2, observation_size), jnp.float32)
    out2 = jax.block_until_ready(dqn_forward(x2, padded_params, action_size))
    assert out2.shape == (batch2, action_size)
    ref2_bf16 = dqn_reference_bf16(x2, padded_params, action_size, observation_size)
    assert jnp.allclose(out2, ref2_bf16, atol=2e-3, rtol=2e-3)

    # Training-style batch: exercises the multi-step parallel grid (tb=512).
    batch3 = 2048
    x3 = jax.random.normal(k_obs, (batch3, observation_size), jnp.float32)
    out3 = jax.block_until_ready(dqn_forward(x3, padded_params, action_size))
    assert out3.shape == (batch3, action_size)
    ref3_bf16 = dqn_reference_bf16(x3, padded_params, action_size, observation_size)
    assert jnp.allclose(out3, ref3_bf16, atol=2e-3, rtol=2e-3)

    print("KERNEL_OK")
</pallas_src>

<mosaic_0001>
module attributes {stable_mosaic.version = 11 : i64} {
  func.func @dqn_kernel(%arg0: i32, %arg1: memref<8x128xbf16, #tpu.memory_space<vmem>>, %arg2: memref<128x256xbf16, #tpu.memory_space<vmem>>, %arg3: memref<1x256xf32, #tpu.memory_space<vmem>>, %arg4: memref<256x256xbf16, #tpu.memory_space<vmem>>, %arg5: memref<1x256xf32, #tpu.memory_space<vmem>>, %arg6: memref<256x128xbf16, #tpu.memory_space<vmem>>, %arg7: memref<1x128xf32, #tpu.memory_space<vmem>>, %arg8: memref<128x128xbf16, #tpu.memory_space<vmem>>, %arg9: memref<1x128xf32, #tpu.memory_space<vmem>>, %arg10: memref<128x128xbf16, #tpu.memory_space<vmem>>, %arg11: memref<1x128xf32, #tpu.memory_space<vmem>>, %arg12: memref<8x128xf32, #tpu.memory_space<vmem>>) attributes {dimension_semantics = [#tpu.dimension_semantics<parallel>], iteration_bounds = array<i64: 1>, scalar_prefetch = 0 : i64, scratch_operands = 0 : i64, tpu.core_type = #tpu.core_type<tc>, window_params = [{transform_indices = @transform_0, window_bounds = array<i64: 8, 128>}, {pipeline_mode = #tpu.pipeline_mode<synchronous>, transform_indices = @transform_1, window_bounds = array<i64: 128, 256>}, {pipeline_mode = #tpu.pipeline_mode<synchronous>, transform_indices = @transform_2, window_bounds = array<i64: 1, 256>}, {pipeline_mode = #tpu.pipeline_mode<synchronous>, transform_indices = @transform_3, window_bounds = array<i64: 256, 256>}, {pipeline_mode = #tpu.pipeline_mode<synchronous>, transform_indices = @transform_4, window_bounds = array<i64: 1, 256>}, {pipeline_mode = #tpu.pipeline_mode<synchronous>, transform_indices = @transform_5, window_bounds = array<i64: 256, 128>}, {pipeline_mode = #tpu.pipeline_mode<synchronous>, transform_indices = @transform_6, window_bounds = array<i64: 1, 128>}, {pipeline_mode = #tpu.pipeline_mode<synchronous>, transform_indices = @transform_7, window_bounds = array<i64: 128, 128>}, {pipeline_mode = #tpu.pipeline_mode<synchronous>, transform_indices = @transform_8, window_bounds = array<i64: 1, 128>}, {pipeline_mode = #tpu.pipeline_mode<synchronous>, transform_indices = @transform_9, window_bounds = array<i64: 128, 128>}, {pipeline_mode = #tpu.pipeline_mode<synchronous>, transform_indices = @transform_10, window_bounds = array<i64: 1, 128>}, {transform_indices = @transform_11, window_bounds = array<i64: 8, 128>}]} {
    %c0 = arith.constant 0 : index
    %c0_0 = arith.constant 0 : index
    %0 = vector.load %arg1[%c0, %c0_0] : memref<8x128xbf16, #tpu.memory_space<vmem>>, vector<8x128xbf16>
    %c0_1 = arith.constant 0 : index
    %c0_2 = arith.constant 0 : index
    %1 = vector.load %arg2[%c0_1, %c0_2] : memref<128x256xbf16, #tpu.memory_space<vmem>>, vector<128x256xbf16>
    %cst = arith.constant dense<0.000000e+00> : vector<8x256xf32>
    %2 = tpu.matmul %0, %1, %cst {dimension_numbers = #tpu.dot_dimension_numbers<[1], [0], [0], [1], [0, 0, 1, 1], [], []>} : vector<8x128xbf16>, vector<128x256xbf16>, vector<8x256xf32> -> vector<8x256xf32>
    %c0_3 = arith.constant 0 : index
    %c0_4 = arith.constant 0 : index
    %3 = vector.load %arg3[%c0_3, %c0_4] : memref<1x256xf32, #tpu.memory_space<vmem>>, vector<1x256xf32>
    %4 = vector.broadcast %3 : vector<1x256xf32> to vector<8x256xf32>
    %5 = arith.addf %2, %4 : vector<8x256xf32>
    %cst_5 = arith.constant 0.000000e+00 : f32
    %6 = vector.broadcast %cst_5 : f32 to vector<8x256xf32>
    %7 = arith.maximumf %5, %6 : vector<8x256xf32>
    %8 = arith.truncf %7 : vector<8x256xf32> to vector<8x256xbf16>
    %c0_6 = arith.constant 0 : index
    %c0_7 = arith.constant 0 : index
    %9 = vector.load %arg4[%c0_6, %c0_7] : memref<256x256xbf16, #tpu.memory_space<vmem>>, vector<256x256xbf16>
    %cst_8 = arith.constant dense<0.000000e+00> : vector<8x256xf32>
    %10 = tpu.matmul %8, %9, %cst_8 {dimension_numbers = #tpu.dot_dimension_numbers<[1], [0], [0], [1], [0, 0, 1, 1], [], []>} : vector<8x256xbf16>, vector<256x256xbf16>, vector<8x256xf32> -> vector<8x256xf32>
    %c0_9 = arith.constant 0 : index
    %c0_10 = arith.constant 0 : index
    %11 = vector.load %arg5[%c0_9, %c0_10] : memref<1x256xf32, #tpu.memory_space<vmem>>, vector<1x256xf32>
    %12 = vector.broadcast %11 : vector<1x256xf32> to vector<8x256xf32>
    %13 = arith.addf %10, %12 : vector<8x256xf32>
    %cst_11 = arith.constant 0.000000e+00 : f32
    %14 = vector.broadcast %cst_11 : f32 to vector<8x256xf32>
    %15 = arith.maximumf %13, %14 : vector<8x256xf32>
    %16 = arith.truncf %15 : vector<8x256xf32> to vector<8x256xbf16>
    %c0_12 = arith.constant 0 : index
    %c0_13 = arith.constant 0 : index
    %17 = vector.load %arg6[%c0_12, %c0_13] : memref<256x128xbf16, #tpu.memory_space<vmem>>, vector<256x128xbf16>
    %cst_14 = arith.constant dense<0.000000e+00> : vector<8x128xf32>
    %18 = tpu.matmul %16, %17, %cst_14 {dimension_numbers = #tpu.dot_dimension_numbers<[1], [0], [0], [1], [0, 0, 1, 1], [], []>} : vector<8x256xbf16>, vector<256x128xbf16>, vector<8x128xf32> -> vector<8x128xf32>
    %c0_15 = arith.constant 0 : index
    %c0_16 = arith.constant 0 : index
    %19 = vector.load %arg7[%c0_15, %c0_16] : memref<1x128xf32, #tpu.memory_space<vmem>>, vector<1x128xf32>
    %20 = vector.broadcast %19 : vector<1x128xf32> to vector<8x128xf32>
    %21 = arith.addf %18, %20 : vector<8x128xf32>
    %cst_17 = arith.constant 0.000000e+00 : f32
    %22 = vector.broadcast %cst_17 : f32 to vector<8x128xf32>
    %23 = arith.maximumf %21, %22 : vector<8x128xf32>
    %24 = arith.truncf %23 : vector<8x128xf32> to vector<8x128xbf16>
    %c0_18 = arith.constant 0 : index
    %c0_19 = arith.constant 0 : index
    %25 = vector.load %arg8[%c0_18, %c0_19] : memref<128x128xbf16, #tpu.memory_space<vmem>>, vector<128x128xbf16>
    %cst_20 = arith.constant dense<0.000000e+00> : vector<8x128xf32>
    %26 = tpu.matmul %24, %25, %cst_20 {dimension_numbers = #tpu.dot_dimension_numbers<[1], [0], [0], [1], [0, 0, 1, 1], [], []>} : vector<8x128xbf16>, vector<128x128xbf16>, vector<8x128xf32> -> vector<8x128xf32>
    %c0_21 = arith.constant 0 : index
    %c0_22 = arith.constant 0 : index
    %27 = vector.load %arg9[%c0_21, %c0_22] : memref<1x128xf32, #tpu.memory_space<vmem>>, vector<1x128xf32>
    %28 = vector.broadcast %27 : vector<1x128xf32> to vector<8x128xf32>
    %29 = arith.addf %26, %28 : vector<8x128xf32>
    %cst_23 = arith.constant 0.000000e+00 : f32
    %30 = vector.broadcast %cst_23 : f32 to vector<8x128xf32>
    %31 = arith.maximumf %29, %30 : vector<8x128xf32>
    %32 = arith.truncf %31 : vector<8x128xf32> to vector<8x128xbf16>
    %c0_24 = arith.constant 0 : index
    %c0_25 = arith.constant 0 : index
    %33 = vector.load %arg10[%c0_24, %c0_25] : memref<128x128xbf16, #tpu.memory_space<vmem>>, vector<128x128xbf16>
    %cst_26 = arith.constant dense<0.000000e+00> : vector<8x128xf32>
    %34 = tpu.matmul %32, %33, %cst_26 {dimension_numbers = #tpu.dot_dimension_numbers<[1], [0], [0], [1], [0, 0, 1, 1], [], []>} : vector<8x128xbf16>, vector<128x128xbf16>, vector<8x128xf32> -> vector<8x128xf32>
    %c0_27 = arith.constant 0 : index
    %c0_28 = arith.constant 0 : index
    %35 = vector.load %arg11[%c0_27, %c0_28] : memref<1x128xf32, #tpu.memory_space<vmem>>, vector<1x128xf32>
    %36 = vector.broadcast %35 : vector<1x128xf32> to vector<8x128xf32>
    %37 = arith.addf %34, %36 : vector<8x128xf32>
    %c0_29 = arith.constant 0 : index
    %c0_30 = arith.constant 0 : index
    %38 = vector.load %arg12[%c0_29, %c0_30] : memref<8x128xf32, #tpu.memory_space<vmem>>, vector<8x128xf32>
    tpu.vector_store %arg12[%c0_29, %c0_30], %37 {strides = array<i32>} : memref<8x128xf32, #tpu.memory_space<vmem>>, vector<8x128xf32>,
    return
  }
  func.func @transform_0(%arg0: i32) -> (i32, i32) {
    %c0_i32 = arith.constant 0 : i32
    %c0_i32_0 = arith.constant 0 : i32
    return %arg0, %c0_i32 : i32, i32
  }
  func.func @transform_1(%arg0: i32) -> (i32, i32) {
    %c0_i32 = arith.constant 0 : i32
    %c0_i32_0 = arith.constant 0 : i32
    %c0_i32_1 = arith.constant 0 : i32
    return %c0_i32, %c0_i32_0 : i32, i32
  }
  func.func @transform_2(%arg0: i32) -> (i32, i32) {
    %c0_i32 = arith.constant 0 : i32
    %c0_i32_0 = arith.constant 0 : i32
    %c0_i32_1 = arith.constant 0 : i32
    return %c0_i32, %c0_i32_0 : i32, i32
  }
  func.func @transform_3(%arg0: i32) -> (i32, i32) {
    %c0_i32 = arith.constant 0 : i32
    %c0_i32_0 = arith.constant 0 : i32
    %c0_i32_1 = arith.constant 0 : i32
    return %c0_i32, %c0_i32_0 : i32, i32
  }
  func.func @transform_4(%arg0: i32) -> (i32, i32) {
    %c0_i32 = arith.constant 0 : i32
    %c0_i32_0 = arith.constant 0 : i32
    %c0_i32_1 = arith.constant 0 : i32
    return %c0_i32, %c0_i32_0 : i32, i32
  }
  func.func @transform_5(%arg0: i32) -> (i32, i32) {
    %c0_i32 = arith.constant 0 : i32
    %c0_i32_0 = arith.constant 0 : i32
    %c0_i32_1 = arith.constant 0 : i32
    return %c0_i32, %c0_i32_0 : i32, i32
  }
  func.func @transform_6(%arg0: i32) -> (i32, i32) {
    %c0_i32 = arith.constant 0 : i32
    %c0_i32_0 = arith.constant 0 : i32
    %c0_i32_1 = arith.constant 0 : i32
    return %c0_i32, %c0_i32_0 : i32, i32
  }
  func.func @transform_7(%arg0: i32) -> (i32, i32) {
    %c0_i32 = arith.constant 0 : i32
    %c0_i32_0 = arith.constant 0 : i32
    %c0_i32_1 = arith.constant 0 : i32
    return %c0_i32, %c0_i32_0 : i32, i32
  }
  func.func @transform_8(%arg0: i32) -> (i32, i32) {
    %c0_i32 = arith.constant 0 : i32
    %c0_i32_0 = arith.constant 0 : i32
    %c0_i32_1 = arith.constant 0 : i32
    return %c0_i32, %c0_i32_0 : i32, i32
  }
  func.func @transform_9(%arg0: i32) -> (i32, i32) {
    %c0_i32 = arith.constant 0 : i32
    %c0_i32_0 = arith.constant 0 : i32
    %c0_i32_1 = arith.constant 0 : i32
    return %c0_i32, %c0_i32_0 : i32, i32
  }
  func.func @transform_10(%arg0: i32) -> (i32, i32) {
    %c0_i32 = arith.constant 0 : i32
    %c0_i32_0 = arith.constant 0 : i32
    %c0_i32_1 = arith.constant 0 : i32
    return %c0_i32, %c0_i32_0 : i32, i32
  }
  func.func @transform_11(%arg0: i32) -> (i32, i32) {
    %c0_i32 = arith.constant 0 : i32
    %c0_i32_0 = arith.constant 0 : i32
    return %arg0, %c0_i32 : i32, i32
  }
}

</mosaic_0001>

<llo_original>
// kernel: dqn_forward.1
$region0: #{dqn_forward.1}
  #allocation0 [shape = 'u32[]', space=smem, size = 0x4, offset = 0x4, fixed_abs, tag = 'smem constant byte address 0x4 - core index']
  #allocation1 [shape = 'u32[144,128]{1,0:T(1,128)}', space=vmem, size = 0x12000, scoped, tag = 'internal scratch']
  %s0 = inlined_call_operand.vmem [shape: bf16[8,128], index: 0, kind: input, shape index: {}]
  %s1 = inlined_call_operand.hbm [shape: bf16[128,256], index: 1, kind: input, shape index: {}]
  %s2 = inlined_call_operand.vmem [shape: f32[1,256], index: 2, kind: input, shape index: {}]
  %s3 = inlined_call_operand.hbm [shape: bf16[256,256], index: 3, kind: input, shape index: {}]
  %s4 = inlined_call_operand.vmem [shape: f32[1,256], index: 4, kind: input, shape index: {}]
  %s5 = inlined_call_operand.hbm [shape: bf16[256,128], index: 5, kind: input, shape index: {}]
  %s6 = inlined_call_operand.vmem [shape: f32[1,128], index: 6, kind: input, shape index: {}]
  %s7 = inlined_call_operand.hbm [shape: bf16[128,128], index: 7, kind: input, shape index: {}]
  %s8 = inlined_call_operand.vmem [shape: f32[1,128], index: 8, kind: input, shape index: {}]
  %s9 = inlined_call_operand.hbm [shape: bf16[128,128], index: 9, kind: input, shape index: {}]
  %s10 = inlined_call_operand.vmem [shape: f32[1,128], index: 10, kind: input, shape index: {}]
  %s11 = inlined_call_operand.vmem [shape: f32[8,128], index: 11, kind: output, shape index: {}]
  %s12 = sld [smem:[#allocation0]]
  $region74: #{dqn_forward.1} parent=0
    _
  %s14 = ssub.s32 1, %s12
  %s15 = scalar_select 0, %s14, %s12
  $region1: #{dqn_forward.1} parent=0
    #allocation2 [shape = 'u8[65536]{0}', space=vmem, size = 0x10000, scoped, tag = 'input window, operand 1, single buffered']
    #allocation3 [shape = 's32[1]{0}', space=sflag, size = 0x4, scoped, tag = 'scoped memory for dqn_forward.1']
    #allocation4 [shape = 'u8[131072]{0}', space=vmem, size = 0x20000, scoped, tag = 'input window, operand 3, single buffered']
    #allocation5 [shape = 's32[1]{0}', space=sflag, size = 0x4, scoped, tag = 'scoped memory for dqn_forward.1']
    #allocation6 [shape = 'u8[65536]{0}', space=vmem, size = 0x10000, scoped, tag = 'input window, operand 5, single buffered']
    #allocation7 [shape = 'u8[32768]{0}', space=vmem, size = 0x8000, scoped, tag = 'input window, operand 7, single buffered']
    #allocation8 [shape = 's32[1]{0}', space=sflag, size = 0x4, scoped, tag = 'scoped memory for dqn_forward.1']
    #allocation9 [shape = 'u8[32768]{0}', space=vmem, size = 0x8000, scoped, tag = 'input window, operand 9, single buffered']
    %16 = vsyncpa [#allocation3], 0
    %17 = vsyncpa [#allocation5], 0
    %18 = vsyncpa [#allocation8], 0
    // Predicated region
    $region2: #{dqn_forward.1} parent=1 // pred_check
      _
    $region3: #{dqn_forward.1} parent=1 // pred_check_branch
      %20 = sbr.rel (0) target = $region5
    $region4: #{dqn_forward.1} parent=1 // pred_region
      _
    $region5: #{dqn_forward.1} parent=1 // pred_fallthru
      _
    // Predicated region
    $region6: #{dqn_forward.1} parent=1 // pred_check
      _
    $region7: #{dqn_forward.1} parent=1 // pred_check_branch
      %22 = sbr.rel (0) target = $region9
    $region8: #{dqn_forward.1} parent=1 // pred_region
      %s24 = ssub.s32 2048, 2048
      %25 = vsyncadd [#allocation3], %s24
      %s26 = sshll.u32 [#allocation2], 4
      %s27 = int_to_ptr.vmem [resolvable:$true] %s26
      %32 = dma.hbm_to_vmem [thread:$0]  %s1, 2048, %s27, [#allocation3], 128, 128, 8
    $region9: #{dqn_forward.1} parent=1 // pred_fallthru
      _
    // Predicated region
    $region10: #{dqn_forward.1} parent=1 // pred_check
      _
    $region11: #{dqn_forward.1} parent=1 // pred_check_branch
      %34 = sbr.rel (0) target = $region13
    $region12: #{dqn_forward.1} parent=1 // pred_region
      _
    $region13: #{dqn_forward.1} parent=1 // pred_fallthru
      _
    // Predicated region
    $region14: #{dqn_forward.1} parent=1 // pred_check
      _
    $region15: #{dqn_forward.1} parent=1 // pred_check_branch
      %36 = sbr.rel (0) target = $region17
    $region16: #{dqn_forward.1} parent=1 // pred_region
      %s38 = ssub.s32 4096, 4096
      %39 = vsyncadd [#allocation5], %s38
      %s40 = sshll.u32 [#allocation4], 4
      %s41 = int_to_ptr.vmem [resolvable:$true] %s40
      %46 = dma.hbm_to_vmem [thread:$0]  %s3, 4096, %s41, [#allocation5], 128, 128, 8
    $region17: #{dqn_forward.1} parent=1 // pred_fallthru
      _
    // Predicated region
    $region18: #{dqn_forward.1} parent=1 // pred_check
      _
    $region19: #{dqn_forward.1} parent=1 // pred_check_branch
      %48 = sbr.rel (0) target = $region21
    $region20: #{dqn_forward.1} parent=1 // pred_region
      _
    $region21: #{dqn_forward.1} parent=1 // pred_fallthru
      _
    // Predicated region
    $region22: #{dqn_forward.1} parent=1 // pred_check
      _
    $region23: #{dqn_forward.1} parent=1 // pred_check_branch
      %50 = sbr.rel (0) target = $region25
    $region24: #{dqn_forward.1} parent=1 // pred_region
      %s52 = ssub.s32 2048, 2048
      %53 = vsyncadd [#allocation5], %s52
      %s54 = sshll.u32 [#allocation6], 4
      %s55 = int_to_ptr.vmem [resolvable:$true] %s54
      %60 = dma.hbm_to_vmem [thread:$0]  %s5, 2048, %s55, [#allocation5], 64, 64, 4
    $region25: #{dqn_forward.1} parent=1 // pred_fallthru
      _
    // Predicated region
    $region26: #{dqn_forward.1} parent=1 // pred_check
      _
    $region27: #{dqn_forward.1} parent=1 // pred_check_branch
      %62 = sbr.rel (0) target = $region29
    $region28: #{dqn_forward.1} parent=1 // pred_region
      _
    $region29: #{dqn_forward.1} parent=1 // pred_fallthru
      _
    // Predicated region
    $region30: #{dqn_forward.1} parent=1 // pred_check
      _
    $region31: #{dqn_forward.1} parent=1 // pred_check_branch
      %64 = sbr.rel (0) target = $region33
    $region32: #{dqn_forward.1} parent=1 // pred_region
      %s66 = ssub.s32 1024, 1024
      %67 = vsyncadd [#allocation8], %s66
      %s68 = sshll.u32 [#allocation7], 4
      %s69 = int_to_ptr.vmem [resolvable:$true] %s68
      %74 = dma.hbm_to_vmem [thread:$0]  %s7, 1024, %s69, [#allocation8], 64, 64, 4
    $region33: #{dqn_forward.1} parent=1 // pred_fallthru
      _
    // Predicated region
    $region34: #{dqn_forward.1} parent=1 // pred_check
      _
    $region35: #{dqn_forward.1} parent=1 // pred_check_branch
      %76 = sbr.rel (0) target = $region37
    $region36: #{dqn_forward.1} parent=1 // pred_region
      _
    $region37: #{dqn_forward.1} parent=1 // pred_fallthru
      _
    // Predicated region
    $region38: #{dqn_forward.1} parent=1 // pred_check
      _
    $region39: #{dqn_forward.1} parent=1 // pred_check_branch
      %78 = sbr.rel (0) target = $region41
    $region40: #{dqn_forward.1} parent=1 // pred_region
      %s80 = ssub.s32 1024, 1024
      %81 = vsyncadd [#allocation8], %s80
      %s82 = sshll.u32 [#allocation9], 4
      %s83 = int_to_ptr.vmem [resolvable:$true] %s82
      %88 = dma.hbm_to_vmem [thread:$0]  %s9, 1024, %s83, [#allocation8], 64, 64, 4
    $region41: #{dqn_forward.1} parent=1 // pred_fallthru
      _
    // Predicated region
    $region42: #{dqn_forward.1} parent=1 // pred_check
      _
    $region43: #{dqn_forward.1} parent=1 // pred_check_branch
      %90 = sbr.rel (0) target = $region45
    $region44: #{dqn_forward.1} parent=1 // pred_region
      _
    $region45: #{dqn_forward.1} parent=1 // pred_fallthru
      _
    // Predicated region
    $region46: #{dqn_forward.1} parent=1 // pred_check
      _
    $region47: #{dqn_forward.1} parent=1 // pred_check_branch
      %92 = sbr.rel (0) target = $region49
    $region48: #{dqn_forward.1} parent=1 // pred_region
      %93 = dma.done [#allocation3], 2048
    $region49: #{dqn_forward.1} parent=1 // pred_fallthru
      _
    // Predicated region
    $region50: #{dqn_forward.1} parent=1 // pred_check
      _
    $region51: #{dqn_forward.1} parent=1 // pred_check_branch
      %95 = sbr.rel (0) target = $region53
    $region52: #{dqn_forward.1} parent=1 // pred_region
      %96 = dma.done [#allocation5], 4096
    $region53: #{dqn_forward.1} parent=1 // pred_fallthru
      _
    // Predicated region
    $region54: #{dqn_forward.1} parent=1 // pred_check
      _
    $region55: #{dqn_forward.1} parent=1 // pred_check_branch
      %98 = sbr.rel (0) target = $region57
    $region56: #{dqn_forward.1} parent=1 // pred_region
      %99 = dma.done [#allocation5], 2048
    $region57: #{dqn_forward.1} parent=1 // pred_fallthru
      _
    // Predicated region
    $region58: #{dqn_forward.1} parent=1 // pred_check
      _
    $region59: #{dqn_forward.1} parent=1 // pred_check_branch
      %101 = sbr.rel (0) target = $region61
    $region60: #{dqn_forward.1} parent=1 // pred_region
      %102 = dma.done [#allocation8], 1024
    $region61: #{dqn_forward.1} parent=1 // pred_fallthru
      _
    // Predicated region
    $region62: #{dqn_forward.1} parent=1 // pred_check
      _
    $region63: #{dqn_forward.1} parent=1 // pred_check_branch
      %104 = sbr.rel (0) target = $region65
    $region64: #{dqn_forward.1} parent=1 // pred_region
      %105 = dma.done [#allocation8], 1024
    $region65: #{dqn_forward.1} parent=1 // pred_fallthru
      _
    %v107 = vld [vmem:[%s0] sm:$0xf]
    %v108 = vld [vmem:[#allocation2] sm:$0xff]
    %v109 = vld [vmem:[#allocation2 + $0x8] sm:$0xff]
    %v110 = vld [vmem:[#allocation2 + $0x10] sm:$0xff]
    %v111 = vld [vmem:[#allocation2 + $0x18] sm:$0xff]
    %v112 = vld [vmem:[#allocation2 + $0x20] sm:$0xff]
    %v113 = vld [vmem:[#allocation2 + $0x28] sm:$0xff]
    %v114 = vld [vmem:[#allocation2 + $0x30] sm:$0xff]
    %v115 = vld [vmem:[#allocation2 + $0x38] sm:$0xff]
    %v116 = vld [vmem:[#allocation2 + $0x40] sm:$0xff]
    %v117 = vld [vmem:[#allocation2 + $0x48] sm:$0xff]
    %v118 = vld [vmem:[#allocation2 + $0x50] sm:$0xff]
    %v119 = vld [vmem:[#allocation2 + $0x58] sm:$0xff]
    %v120 = vld [vmem:[#allocation2 + $0x60] sm:$0xff]
    %v121 = vld [vmem:[#allocation2 + $0x68] sm:$0xff]
    %v122 = vld [vmem:[#allocation2 + $0x70] sm:$0xff]
    %v123 = vld [vmem:[#allocation2 + $0x78] sm:$0xff]
    %v124 = vld [vmem:[%s2] sm:$0x3]
    %v126 = vlaneseq
    %v127 = vshrl.u32 %v126, 7
    %v128 = vsub.s32 0, %v127
    %v129 = vrot.slane %v124, %v128
    %v130 = vlaneseq
    %v131 = vshrl.u32 %v130, 7
    %v132 = vsub.s32 1, %v131
    %v133 = vrot.slane %v124, %v132
    %v152 = vunpack.c.l.b16 %v108
    %v153 = vunpack.c.h.b16 %v108
    %v154 = vunpack.c.l.b16 %v109
    %v155 = vunpack.c.h.b16 %v109
    %v156 = vunpack.c.l.b16 %v110
    %v157 = vunpack.c.h.b16 %v110
    %v158 = vunpack.c.l.b16 %v111
    %v159 = vunpack.c.h.b16 %v111
    %v160 = vunpack.c.l.b16 %v112
    %v161 = vunpack.c.h.b16 %v112
    %v162 = vunpack.c.l.b16 %v113
    %v163 = vunpack.c.h.b16 %v113
    %v164 = vunpack.c.l.b16 %v114
    %v165 = vunpack.c.h.b16 %v114
    %v166 = vunpack.c.l.b16 %v115
    %v167 = vunpack.c.h.b16 %v115
    %v168 = vunpack.c.l.b16 %v116
    %v169 = vunpack.c.h.b16 %v116
    %v170 = vunpack.c.l.b16 %v117
    %v171 = vunpack.c.h.b16 %v117
    %v172 = vunpack.c.l.b16 %v118
    %v173 = vunpack.c.h.b16 %v118
    %v174 = vunpack.c.l.b16 %v119
    %v175 = vunpack.c.h.b16 %v119
    %v176 = vunpack.c.l.b16 %v120
    %v177 = vunpack.c.h.b16 %v120
    %v178 = vunpack.c.l.b16 %v121
    %v179 = vunpack.c.h.b16 %v121
    %v180 = vunpack.c.l.b16 %v122
    %v181 = vunpack.c.h.b16 %v122
    %v182 = vunpack.c.l.b16 %v123
    %v183 = vunpack.c.h.b16 %v123
    %v184 = vpack.c.b16 %v154, %v152
    %v185 = vpack.c.b16 %v155, %v153
    %v186 = vpack.c.b16 %v158, %v156
    %v187 = vpack.c.b16 %v159, %v157
    %v188 = vpack.c.b16 %v162, %v160
    %v189 = vpack.c.b16 %v163, %v161
    %v190 = vpack.c.b16 %v166, %v164
    %v191 = vpack.c.b16 %v167, %v165
    %v192 = vpack.c.b16 %v170, %v168
    %v193 = vpack.c.b16 %v171, %v169
    %v194 = vpack.c.b16 %v174, %v172
    %v195 = vpack.c.b16 %v175, %v173
    %v196 = vpack.c.b16 %v178, %v176
    %v197 = vpack.c.b16 %v179, %v177
    %v198 = vpack.c.b16 %v182, %v180
    %v199 = vpack.c.b16 %v183, %v181
    %216 = vmatprep.subr.bf16.mxu0 %v185
    %217 = vmatpush1.bf16.msra.mxu0 %v184
    %218 = vmatprep.subr.bf16.mxu0 %v187
    %219 = vmatpush1.bf16.msra.mxu0 %v186
    %220 = vmatprep.subr.bf16.mxu0 %v189
    %221 = vmatpush1.bf16.msra.mxu0 %v188
    %222 = vmatprep.subr.bf16.mxu0 %v191
    %223 = vmatpush1.bf16.msra.mxu0 %v190
    %224 = vmatprep.subr.bf16.mxu0 %v193
    %225 = vmatpush1.bf16.msra.mxu0 %v192
    %226 = vmatprep.subr.bf16.mxu0 %v195
    %227 = vmatpush1.bf16.msra.mxu0 %v194
    %228 = vmatprep.subr.bf16.mxu0 %v197
    %229 = vmatpush1.bf16.msra.mxu0 %v196
    %230 = vmatprep.subr.bf16.mxu0 %v199
    %231 = vmatpush1.bf16.msra.mxu0 %v198
    %232 = vmatprep.subr.bf16.mxu0 0
    %233 = vmatpush1.bf16.msra.mxu0 0
    %234 = vmatprep.subr.bf16.mxu0 0
    %235 = vmatpush1.bf16.msra.mxu0 0
    %236 = vmatprep.subr.bf16.mxu0 0
    %237 = vmatpush1.bf16.msra.mxu0 0
    %238 = vmatprep.subr.bf16.mxu0 0
    %239 = vmatpush1.bf16.msra.mxu0 0
    %240 = vmatprep.subr.bf16.mxu0 0
    %241 = vmatpush1.bf16.msra.mxu0 0
    %242 = vmatprep.subr.bf16.mxu0 0
    %243 = vmatpush1.bf16.msra.mxu0 0
    %244 = vmatprep.subr.bf16.mxu0 0
    %245 = vmatpush1.bf16.msra.mxu0 0
    %246 = vmatprep.subr.bf16.mxu0 0
    %247 = vmatpush1.bf16.msra.mxu0 0
    %248 = vmatprep.mubr.bf16.mxu0 0
    %249 = vmatmul.mubr.bf16.gmra.mrb[0].mxu0 %v107
    %v250 = vpop.f32.mrb[0].mxu0
    %v251 = vadd.f32 %v129, %v250
    %v252 = vpop.f32.mrb[0].mxu0
    %v253 = vadd.f32 %v133, %v252
    %v254 = vpop.f32.mrb[0].mxu0
    %v255 = vpop.f32.mrb[0].mxu0
    %256 = vdwg.mxu0
    %v257 = vmax.f32 %v251, 0.0
    %v258 = vmax.f32 %v253, 0.0
    %v259 = vpack.c.bf16 %v257, %v257
    %v260 = vpack.c.bf16 %v258, %v258
    %v261 = vld [vmem:[#allocation4] sm:$0xff]
    %v262 = vld [vmem:[#allocation4 + $0x8] sm:$0xff]
    %v263 = vld [vmem:[#allocation4 + $0x10] sm:$0xff]
    %v264 = vld [vmem:[#allocation4 + $0x18] sm:$0xff]
    %v265 = vld [vmem:[#allocation4 + $0x20] sm:$0xff]
    %v266 = vld [vmem:[#allocation4 + $0x28] sm:$0xff]
    %v267 = vld [vmem:[#allocation4 + $0x30] sm:$0xff]
    %v268 = vld [vmem:[#allocation4 + $0x38] sm:$0xff]
    %v269 = vld [vmem:[#allocation4 + $0x40] sm:$0xff]
    %v270 = vld [vmem:[#allocation4 + $0x48] sm:$0xff]
    %v271 = vld [vmem:[#allocation4 + $0x50] sm:$0xff]
    %v272 = vld [vmem:[#allocation4 + $0x58] sm:$0xff]
    %v273 = vld [vmem:[#allocation4 + $0x60] sm:$0xff]
    %v274 = vld [vmem:[#allocation4 + $0x68] sm:$0xff]
    %v275 = vld [vmem:[#allocation4 + $0x70] sm:$0xff]
    %v276 = vld [vmem:[#allocation4 + $0x78] sm:$0xff]
    %v277 = vld [vmem:[#allocation4 + $0x80] sm:$0xff]
    %v278 = vld [vmem:[#allocation4 + $0x88] sm:$0xff]
    %v279 = vld [vmem:[#allocation4 + $0x90] sm:$0xff]
    %v280 = vld [vmem:[#allocation4 + $0x98] sm:$0xff]
    %v281 = vld [vmem:[#allocation4 + $0xa0] sm:$0xff]
    %v282 = vld [vmem:[#allocation4 + $0xa8] sm:$0xff]
    %v283 = vld [vmem:[#allocation4 + $0xb0] sm:$0xff]
    %v284 = vld [vmem:[#allocation4 + $0xb8] sm:$0xff]
    %v285 = vld [vmem:[#allocation4 + $0xc0] sm:$0xff]
    %v286 = vld [vmem:[#allocation4 + $0xc8] sm:$0xff]
    %v287 = vld [vmem:[#allocation4 + $0xd0] sm:$0xff]
    %v288 = vld [vmem:[#allocation4 + $0xd8] sm:$0xff]
    %v289 = vld [vmem:[#allocation4 + $0xe0] sm:$0xff]
    %v290 = vld [vmem:[#allocation4 + $0xe8] sm:$0xff]
    %v291 = vld [vmem:[#allocation4 + $0xf0] sm:$0xff]
    %v292 = vld [vmem:[#allocation4 + $0xf8] sm:$0xff]
    %v293 = vld [vmem:[%s4] sm:$0x3]
    %v295 = vlaneseq
    %v296 = vshrl.u32 %v295, 7
    %v297 = vsub.s32 0, %v296
    %v298 = vrot.slane %v293, %v297
    %v299 = vlaneseq
    %v300 = vshrl.u32 %v299, 7
    %v301 = vsub.s32 1, %v300
    %v302 = vrot.slane %v293, %v301
    %v337 = vunpack.c.l.b16 %v261
    %v338 = vunpack.c.h.b16 %v261
    %v339 = vunpack.c.l.b16 %v262
    %v340 = vunpack.c.h.b16 %v262
    %v341 = vunpack.c.l.b16 %v263
    %v342 = vunpack.c.h.b16 %v263
    %v343 = vunpack.c.l.b16 %v264
    %v344 = vunpack.c.h.b16 %v264
    %v345 = vunpack.c.l.b16 %v265
    %v346 = vunpack.c.h.b16 %v265
    %v347 = vunpack.c.l.b16 %v266
    %v348 = vunpack.c.h.b16 %v266
    %v349 = vunpack.c.l.b16 %v267
    %v350 = vunpack.c.h.b16 %v267
    %v351 = vunpack.c.l.b16 %v268
    %v352 = vunpack.c.h.b16 %v268
    %v353 = vunpack.c.l.b16 %v269
    %v354 = vunpack.c.h.b16 %v269
    %v355 = vunpack.c.l.b16 %v270
    %v356 = vunpack.c.h.b16 %v270
    %v357 = vunpack.c.l.b16 %v271
    %v358 = vunpack.c.h.b16 %v271
    %v359 = vunpack.c.l.b16 %v272
    %v360 = vunpack.c.h.b16 %v272
    %v361 = vunpack.c.l.b16 %v273
    %v362 = vunpack.c.h.b16 %v273
    %v363 = vunpack.c.l.b16 %v274
    %v364 = vunpack.c.h.b16 %v274
    %v365 = vunpack.c.l.b16 %v275
    %v366 = vunpack.c.h.b16 %v275
    %v367 = vunpack.c.l.b16 %v276
    %v368 = vunpack.c.h.b16 %v276
    %v369 = vunpack.c.l.b16 %v277
    %v370 = vunpack.c.h.b16 %v277
    %v371 = vunpack.c.l.b16 %v278
    %v372 = vunpack.c.h.b16 %v278
    %v373 = vunpack.c.l.b16 %v279
    %v374 = vunpack.c.h.b16 %v279
    %v375 = vunpack.c.l.b16 %v280
    %v376 = vunpack.c.h.b16 %v280
    %v377 = vunpack.c.l.b16 %v281
    %v378 = vunpack.c.h.b16 %v281
    %v379 = vunpack.c.l.b16 %v282
    %v380 = vunpack.c.h.b16 %v282
    %v381 = vunpack.c.l.b16 %v283
    %v382 = vunpack.c.h.b16 %v283
    %v383 = vunpack.c.l.b16 %v284
    %v384 = vunpack.c.h.b16 %v284
    %v385 = vunpack.c.l.b16 %v285
    %v386 = vunpack.c.h.b16 %v285
    %v387 = vunpack.c.l.b16 %v286
    %v388 = vunpack.c.h.b16 %v286
    %v389 = vunpack.c.l.b16 %v287
    %v390 = vunpack.c.h.b16 %v287
    %v391 = vunpack.c.l.b16 %v288
    %v392 = vunpack.c.h.b16 %v288
    %v393 = vunpack.c.l.b16 %v289
    %v394 = vunpack.c.h.b16 %v289
    %v395 = vunpack.c.l.b16 %v290
    %v396 = vunpack.c.h.b16 %v290
    %v397 = vunpack.c.l.b16 %v291
    %v398 = vunpack.c.h.b16 %v291
    %v399 = vunpack.c.l.b16 %v292
    %v400 = vunpack.c.h.b16 %v292
    %v401 = vpack.c.b16 %v339, %v337
    %v402 = vpack.c.b16 %v340, %v338
    %v403 = vpack.c.b16 %v343, %v341
    %v404 = vpack.c.b16 %v344, %v342
    %v405 = vpack.c.b16 %v347, %v345
    %v406 = vpack.c.b16 %v348, %v346
    %v407 = vpack.c.b16 %v351, %v349
    %v408 = vpack.c.b16 %v352, %v350
    %v409 = vpack.c.b16 %v355, %v353
    %v410 = vpack.c.b16 %v356, %v354
    %v411 = vpack.c.b16 %v359, %v357
    %v412 = vpack.c.b16 %v360, %v358
    %v413 = vpack.c.b16 %v363, %v361
    %v414 = vpack.c.b16 %v364, %v362
    %v415 = vpack.c.b16 %v367, %v365
    %v416 = vpack.c.b16 %v368, %v366
    %v417 = vpack.c.b16 %v371, %v369
    %v418 = vpack.c.b16 %v372, %v370
    %v419 = vpack.c.b16 %v375, %v373
    %v420 = vpack.c.b16 %v376, %v374
    %v421 = vpack.c.b16 %v379, %v377
    %v422 = vpack.c.b16 %v380, %v378
    %v423 = vpack.c.b16 %v383, %v381
    %v424 = vpack.c.b16 %v384, %v382
    %v425 = vpack.c.b16 %v387, %v385
    %v426 = vpack.c.b16 %v388, %v386
    %v427 = vpack.c.b16 %v391, %v389
    %v428 = vpack.c.b16 %v392, %v390
    %v429 = vpack.c.b16 %v395, %v393
    %v430 = vpack.c.b16 %v396, %v394
    %v431 = vpack.c.b16 %v399, %v397
    %v432 = vpack.c.b16 %v400, %v398
    %465 = vmatprep.subr.bf16.mxu0 %v402
    %466 = vmatpush1.bf16.msra.mxu0 %v401
    %467 = vmatprep.subr.bf16.mxu0 %v404
    %468 = vmatpush1.bf16.msra.mxu0 %v403
    %469 = vmatprep.subr.bf16.mxu0 %v406
    %470 = vmatpush1.bf16.msra.mxu0 %v405
    %471 = vmatprep.subr.bf16.mxu0 %v408
    %472 = vmatpush1.bf16.msra.mxu0 %v407
    %473 = vmatprep.subr.bf16.mxu0 %v410
    %474 = vmatpush1.bf16.msra.mxu0 %v409
    %475 = vmatprep.subr.bf16.mxu0 %v412
    %476 = vmatpush1.bf16.msra.mxu0 %v411
    %477 = vmatprep.subr.bf16.mxu0 %v414
    %478 = vmatpush1.bf16.msra.mxu0 %v413
    %479 = vmatprep.subr.bf16.mxu0 %v416
    %480 = vmatpush1.bf16.msra.mxu0 %v415
    %481 = vmatprep.subr.bf16.mxu0 %v418
    %482 = vmatpush1.bf16.msra.mxu0 %v417
    %483 = vmatprep.subr.bf16.mxu0 %v420
    %484 = vmatpush1.bf16.msra.mxu0 %v419
    %485 = vmatprep.subr.bf16.mxu0 %v422
    %486 = vmatpush1.bf16.msra.mxu0 %v421
    %487 = vmatprep.subr.bf16.mxu0 %v424
    %488 = vmatpush1.bf16.msra.mxu0 %v423
    %489 = vmatprep.subr.bf16.mxu0 %v426
    %490 = vmatpush1.bf16.msra.mxu0 %v425
    %491 = vmatprep.subr.bf16.mxu0 %v428
    %492 = vmatpush1.bf16.msra.mxu0 %v427
    %493 = vmatprep.subr.bf16.mxu0 %v430
    %494 = vmatpush1.bf16.msra.mxu0 %v429
    %495 = vmatprep.subr.bf16.mxu0 %v432
    %496 = vmatpush1.bf16.msra.mxu0 %v431
    %497 = vmatprep.mubr.bf16.mxu0 %v260
    %498 = vmatmul.mubr.bf16.gmra.mrb[0].mxu0 %v259
    %v499 = vpop.f32.mrb[0].mxu0
    %v500 = vadd.f32 %v298, %v499
    %v501 = vpop.f32.mrb[0].mxu0
    %v502 = vadd.f32 %v302, %v501
    %v503 = vpop.f32.mrb[0].mxu0
    %v504 = vpop.f32.mrb[0].mxu0
    %505 = vdwg.mxu0
    %v506 = vmax.f32 %v500, 0.0
    %v507 = vmax.f32 %v502, 0.0
    %v508 = vpack.c.bf16 %v506, %v506
    %v509 = vpack.c.bf16 %v507, %v507
    %v510 = vld [vmem:[#allocation6] sm:$0xf]
    %v511 = vld [vmem:[#allocation6 + $0x4] sm:$0xf]
    %v512 = vld [vmem:[#allocation6 + $0x8] sm:$0xf]
    %v513 = vld [vmem:[#allocation6 + $0xc] sm:$0xf]
    %v514 = vld [vmem:[#allocation6 + $0x10] sm:$0xf]
    %v515 = vld [vmem:[#allocation6 + $0x14] sm:$0xf]
    %v516 = vld [vmem:[#allocation6 + $0x18] sm:$0xf]
    %v517 = vld [vmem:[#allocation6 + $0x1c] sm:$0xf]
    %v518 = vld [vmem:[#allocation6 + $0x20] sm:$0xf]
    %v519 = vld [vmem:[#allocation6 + $0x24] sm:$0xf]
    %v520 = vld [vmem:[#allocation6 + $0x28] sm:$0xf]
    %v521 = vld [vmem:[#allocation6 + $0x2c] sm:$0xf]
    %v522 = vld [vmem:[#allocation6 + $0x30] sm:$0xf]
    %v523 = vld [vmem:[#allocation6 + $0x34] sm:$0xf]
    %v524 = vld [vmem:[#allocation6 + $0x38] sm:$0xf]
    %v525 = vld [vmem:[#allocation6 + $0x3c] sm:$0xf]
    %v526 = vld [vmem:[#allocation6 + $0x40] sm:$0xf]
    %v527 = vld [vmem:[#allocation6 + $0x44] sm:$0xf]
    %v528 = vld [vmem:[#allocation6 + $0x48] sm:$0xf]
    %v529 = vld [vmem:[#allocation6 + $0x4c] sm:$0xf]
    %v530 = vld [vmem:[#allocation6 + $0x50] sm:$0xf]
    %v531 = vld [vmem:[#allocation6 + $0x54] sm:$0xf]
    %v532 = vld [vmem:[#allocation6 + $0x58] sm:$0xf]
    %v533 = vld [vmem:[#allocation6 + $0x5c] sm:$0xf]
    %v534 = vld [vmem:[#allocation6 + $0x60] sm:$0xf]
    %v535 = vld [vmem:[#allocation6 + $0x64] sm:$0xf]
    %v536 = vld [vmem:[#allocation6 + $0x68] sm:$0xf]
    %v537 = vld [vmem:[#allocation6 + $0x6c] sm:$0xf]
    %v538 = vld [vmem:[#allocation6 + $0x70] sm:$0xf]
    %v539 = vld [vmem:[#allocation6 + $0x74] sm:$0xf]
    %v540 = vld [vmem:[#allocation6 + $0x78] sm:$0xf]
    %v541 = vld [vmem:[#allocation6 + $0x7c] sm:$0xf]
    %v542 = vld [vmem:[%s6] sm:$0x1]
    %v544 = vlaneseq
    %v545 = vshrl.u32 %v544, 7
    %v546 = vsub.s32 0, %v545
    %v547 = vrot.slane %v542, %v546
    %v581 = vunpack.c.l.b16 %v510
    %v582 = vunpack.c.l.b16 %v511
    %v583 = vunpack.c.l.b16 %v512
    %v584 = vunpack.c.l.b16 %v513
    %v585 = vunpack.c.l.b16 %v514
    %v586 = vunpack.c.l.b16 %v515
    %v587 = vunpack.c.l.b16 %v516
    %v588 = vunpack.c.l.b16 %v517
    %v589 = vunpack.c.l.b16 %v518
    %v590 = vunpack.c.l.b16 %v519
    %v591 = vunpack.c.l.b16 %v520
    %v592 = vunpack.c.l.b16 %v521
    %v593 = vunpack.c.l.b16 %v522
    %v594 = vunpack.c.l.b16 %v523
    %v595 = vunpack.c.l.b16 %v524
    %v596 = vunpack.c.l.b16 %v525
    %v597 = vunpack.c.l.b16 %v526
    %v598 = vunpack.c.l.b16 %v527
    %v599 = vunpack.c.l.b16 %v528
    %v600 = vunpack.c.l.b16 %v529
    %v601 = vunpack.c.l.b16 %v530
    %v602 = vunpack.c.l.b16 %v531
    %v603 = vunpack.c.l.b16 %v532
    %v604 = vunpack.c.l.b16 %v533
    %v605 = vunpack.c.l.b16 %v534
    %v606 = vunpack.c.l.b16 %v535
    %v607 = vunpack.c.l.b16 %v536
    %v608 = vunpack.c.l.b16 %v537
    %v609 = vunpack.c.l.b16 %v538
    %v610 = vunpack.c.l.b16 %v539
    %v611 = vunpack.c.l.b16 %v540
    %v612 = vunpack.c.l.b16 %v541
    %v613 = vpack.c.b16 %v582, %v581
    %v614 = vpack.c.b16 %v584, %v583
    %v615 = vpack.c.b16 %v586, %v585
    %v616 = vpack.c.b16 %v588, %v587
    %v617 = vpack.c.b16 %v590, %v589
    %v618 = vpack.c.b16 %v592, %v591
    %v619 = vpack.c.b16 %v594, %v593
    %v620 = vpack.c.b16 %v596, %v595
    %v621 = vpack.c.b16 %v598, %v597
    %v622 = vpack.c.b16 %v600, %v599
    %v623 = vpack.c.b16 %v602, %v601
    %v624 = vpack.c.b16 %v604, %v603
    %v625 = vpack.c.b16 %v606, %v605
    %v626 = vpack.c.b16 %v608, %v607
    %v627 = vpack.c.b16 %v610, %v609
    %v628 = vpack.c.b16 %v612, %v611
    %645 = vmatprep.subr.bf16.mxu0 0
    %646 = vmatpush1.bf16.msra.mxu0 %v613
    %647 = vmatprep.subr.bf16.mxu0 0
    %648 = vmatpush1.bf16.msra.mxu0 %v614
    %649 = vmatprep.subr.bf16.mxu0 0
    %650 = vmatpush1.bf16.msra.mxu0 %v615
    %651 = vmatprep.subr.bf16.mxu0 0
    %652 = vmatpush1.bf16.msra.mxu0 %v616
    %653 = vmatprep.subr.bf16.mxu0 0
    %654 = vmatpush1.bf16.msra.mxu0 %v617
    %655 = vmatprep.subr.bf16.mxu0 0
    %656 = vmatpush1.bf16.msra.mxu0 %v618
    %657 = vmatprep.subr.bf16.mxu0 0
    %658 = vmatpush1.bf16.msra.mxu0 %v619
    %659 = vmatprep.subr.bf16.mxu0 0
    %660 = vmatpush1.bf16.msra.mxu0 %v620
    %661 = vmatprep.subr.bf16.mxu0 0
    %662 = vmatpush1.bf16.msra.mxu0 %v621
    %663 = vmatprep.subr.bf16.mxu0 0
    %664 = vmatpush1.bf16.msra.mxu0 %v622
    %665 = vmatprep.subr.bf16.mxu0 0
    %666 = vmatpush1.bf16.msra.mxu0 %v623
    %667 = vmatprep.subr.bf16.mxu0 0
    %668 = vmatpush1.bf16.msra.mxu0 %v624
    %669 = vmatprep.subr.bf16.mxu0 0
    %670 = vmatpush1.bf16.msra.mxu0 %v625
    %671 = vmatprep.subr.bf16.mxu0 0
    %672 = vmatpush1.bf16.msra.mxu0 %v626
    %673 = vmatprep.subr.bf16.mxu0 0
    %674 = vmatpush1.bf16.msra.mxu0 %v627
    %675 = vmatprep.subr.bf16.mxu0 0
    %676 = vmatpush1.bf16.msra.mxu0 %v628
    %677 = vmatprep.mubr.bf16.mxu0 %v509
    %678 = vmatmul.mubr.bf16.gmra.mrb[0].mxu0 %v508
    %v679 = vpop.f32.mrb[0].mxu0
    %v680 = vadd.f32 %v547, %v679
    %v681 = vpop.f32.mrb[0].mxu0
    %v682 = vpop.f32.mrb[0].mxu0
    %v683 = vpop.f32.mrb[0].mxu0
    %684 = vdwg.mxu0
    %v685 = vmax.f32 %v680, 0.0
    %v686 = vpack.c.bf16 %v685, %v685
    %v687 = vld [vmem:[#allocation7] sm:$0xf]
    %v688 = vld [vmem:[#allocation7 + $0x4] sm:$0xf]
    %v689 = vld [vmem:[#allocation7 + $0x8] sm:$0xf]
    %v690 = vld [vmem:[#allocation7 + $0xc] sm:$0xf]
    %v691 = vld [vmem:[#allocation7 + $0x10] sm:$0xf]
    %v692 = vld [vmem:[#allocation7 + $0x14] sm:$0xf]
    %v693 = vld [vmem:[#allocation7 + $0x18] sm:$0xf]
    %v694 = vld [vmem:[#allocation7 + $0x1c] sm:$0xf]
    %v695 = vld [vmem:[#allocation7 + $0x20] sm:$0xf]
    %v696 = vld [vmem:[#allocation7 + $0x24] sm:$0xf]
    %v697 = vld [vmem:[#allocation7 + $0x28] sm:$0xf]
    %v698 = vld [vmem:[#allocation7 + $0x2c] sm:$0xf]
    %v699 = vld [vmem:[#allocation7 + $0x30] sm:$0xf]
    %v700 = vld [vmem:[#allocation7 + $0x34] sm:$0xf]
    %v701 = vld [vmem:[#allocation7 + $0x38] sm:$0xf]
    %v702 = vld [vmem:[#allocation7 + $0x3c] sm:$0xf]
    %v703 = vld [vmem:[%s8] sm:$0x1]
    %v705 = vlaneseq
    %v706 = vshrl.u32 %v705, 7
    %v707 = vsub.s32 0, %v706
    %v708 = vrot.slane %v703, %v707
    %v726 = vunpack.c.l.b16 %v687
    %v727 = vunpack.c.l.b16 %v688
    %v728 = vunpack.c.l.b16 %v689
    %v729 = vunpack.c.l.b16 %v690
    %v730 = vunpack.c.l.b16 %v691
    %v731 = vunpack.c.l.b16 %v692
    %v732 = vunpack.c.l.b16 %v693
    %v733 = vunpack.c.l.b16 %v694
    %v734 = vunpack.c.l.b16 %v695
    %v735 = vunpack.c.l.b16 %v696
    %v736 = vunpack.c.l.b16 %v697
    %v737 = vunpack.c.l.b16 %v698
    %v738 = vunpack.c.l.b16 %v699
    %v739 = vunpack.c.l.b16 %v700
    %v740 = vunpack.c.l.b16 %v701
    %v741 = vunpack.c.l.b16 %v702
    %v742 = vpack.c.b16 %v727, %v726
    %v743 = vpack.c.b16 %v729, %v728
    %v744 = vpack.c.b16 %v731, %v730
    %v745 = vpack.c.b16 %v733, %v732
    %v746 = vpack.c.b16 %v735, %v734
    %v747 = vpack.c.b16 %v737, %v736
    %v748 = vpack.c.b16 %v739, %v738
    %v749 = vpack.c.b16 %v741, %v740
    %758 = vmatprep.subr.bf16.mxu0 0
    %759 = vmatpush1.bf16.msra.mxu0 %v742
    %760 = vmatprep.subr.bf16.mxu0 0
    %761 = vmatpush1.bf16.msra.mxu0 %v743
    %762 = vmatprep.subr.bf16.mxu0 0
    %763 = vmatpush1.bf16.msra.mxu0 %v744
    %764 = vmatprep.subr.bf16.mxu0 0
    %765 = vmatpush1.bf16.msra.mxu0 %v745
    %766 = vmatprep.subr.bf16.mxu0 0
    %767 = vmatpush1.bf16.msra.mxu0 %v746
    %768 = vmatprep.subr.bf16.mxu0 0
    %769 = vmatpush1.bf16.msra.mxu0 %v747
    %770 = vmatprep.subr.bf16.mxu0 0
    %771 = vmatpush1.bf16.msra.mxu0 %v748
    %772 = vmatprep.subr.bf16.mxu0 0
    %773 = vmatpush1.bf16.msra.mxu0 %v749
    %774 = vmatprep.subr.bf16.mxu0 0
    %775 = vmatpush1.bf16.msra.mxu0 0
    %776 = vmatprep.subr.bf16.mxu0 0
    %777 = vmatpush1.bf16.msra.mxu0 0
    %778 = vmatprep.subr.bf16.mxu0 0
    %779 = vmatpush1.bf16.msra.mxu0 0
    %780 = vmatprep.subr.bf16.mxu0 0
    %781 = vmatpush1.bf16.msra.mxu0 0
    %782 = vmatprep.subr.bf16.mxu0 0
    %783 = vmatpush1.bf16.msra.mxu0 0
    %784 = vmatprep.subr.bf16.mxu0 0
    %785 = vmatpush1.bf16.msra.mxu0 0
    %786 = vmatprep.subr.bf16.mxu0 0
    %787 = vmatpush1.bf16.msra.mxu0 0
    %788 = vmatprep.subr.bf16.mxu0 0
    %789 = vmatpush1.bf16.msra.mxu0 0
    %790 = vmatprep.mubr.bf16.mxu0 0
    %791 = vmatmul.mubr.bf16.gmra.mrb[0].mxu0 %v686
    %v792 = vpop.f32.mrb[0].mxu0
    %v793 = vadd.f32 %v708, %v792
    %v794 = vpop.f32.mrb[0].mxu0
    %v795 = vpop.f32.mrb[0].mxu0
    %v796 = vpop.f32.mrb[0].mxu0
    %797 = vdwg.mxu0
    %v798 = vmax.f32 %v793, 0.0
    %v799 = vpack.c.bf16 %v798, %v798
    %v800 = vld [vmem:[#allocation9] sm:$0xf]
    %v801 = vld [vmem:[#allocation9 + $0x4] sm:$0xf]
    %v802 = vld [vmem:[#allocation9 + $0x8] sm:$0xf]
    %v803 = vld [vmem:[#allocation9 + $0xc] sm:$0xf]
    %v804 = vld [vmem:[#allocation9 + $0x10] sm:$0xf]
    %v805 = vld [vmem:[#allocation9 + $0x14] sm:$0xf]
    %v806 = vld [vmem:[#allocation9 + $0x18] sm:$0xf]
    %v807 = vld [vmem:[#allocation9 + $0x1c] sm:$0xf]
    %v808 = vld [vmem:[#allocation9 + $0x20] sm:$0xf]
    %v809 = vld [vmem:[#allocation9 + $0x24] sm:$0xf]
    %v810 = vld [vmem:[#allocation9 + $0x28] sm:$0xf]
    %v811 = vld [vmem:[#allocation9 + $0x2c] sm:$0xf]
    %v812 = vld [vmem:[#allocation9 + $0x30] sm:$0xf]
    %v813 = vld [vmem:[#allocation9 + $0x34] sm:$0xf]
    %v814 = vld [vmem:[#allocation9 + $0x38] sm:$0xf]
    %v815 = vld [vmem:[#allocation9 + $0x3c] sm:$0xf]
    %v816 = vld [vmem:[%s10] sm:$0x1]
    %v818 = vlaneseq
    %v819 = vshrl.u32 %v818, 7
    %v820 = vsub.s32 0, %v819
    %v821 = vrot.slane %v816, %v820
    %v839 = vunpack.c.l.b16 %v800
    %v840 = vunpack.c.l.b16 %v801
    %v841 = vunpack.c.l.b16 %v802
    %v842 = vunpack.c.l.b16 %v803
    %v843 = vunpack.c.l.b16 %v804
    %v844 = vunpack.c.l.b16 %v805
    %v845 = vunpack.c.l.b16 %v806
    %v846 = vunpack.c.l.b16 %v807
    %v847 = vunpack.c.l.b16 %v808
    %v848 = vunpack.c.l.b16 %v809
    %v849 = vunpack.c.l.b16 %v810
    %v850 = vunpack.c.l.b16 %v811
    %v851 = vunpack.c.l.b16 %v812
    %v852 = vunpack.c.l.b16 %v813
    %v853 = vunpack.c.l.b16 %v814
    %v854 = vunpack.c.l.b16 %v815
    %v855 = vpack.c.b16 %v840, %v839
    %v856 = vpack.c.b16 %v842, %v841
    %v857 = vpack.c.b16 %v844, %v843
    %v858 = vpack.c.b16 %v846, %v845
    %v859 = vpack.c.b16 %v848, %v847
    %v860 = vpack.c.b16 %v850, %v849
    %v861 = vpack.c.b16 %v852, %v851
    %v862 = vpack.c.b16 %v854, %v853
    %871 = vmatprep.subr.bf16.mxu0 0
    %872 = vmatpush1.bf16.msra.mxu0 %v855
    %873 = vmatprep.subr.bf16.mxu0 0
    %874 = vmatpush1.bf16.msra.mxu0 %v856
    %875 = vmatprep.subr.bf16.mxu0 0
    %876 = vmatpush1.bf16.msra.mxu0 %v857
    %877 = vmatprep.subr.bf16.mxu0 0
    %878 = vmatpush1.bf16.msra.mxu0 %v858
    %879 = vmatprep.subr.bf16.mxu0 0
    %880 = vmatpush1.bf16.msra.mxu0 %v859
    %881 = vmatprep.subr.bf16.mxu0 0
    %882 = vmatpush1.bf16.msra.mxu0 %v860
    %883 = vmatprep.subr.bf16.mxu0 0
    %884 = vmatpush1.bf16.msra.mxu0 %v861
    %885 = vmatprep.subr.bf16.mxu0 0
    %886 = vmatpush1.bf16.msra.mxu0 %v862
    %887 = vmatprep.subr.bf16.mxu0 0
    %888 = vmatpush1.bf16.msra.mxu0 0
    %889 = vmatprep.subr.bf16.mxu0 0
    %890 = vmatpush1.bf16.msra.mxu0 0
    %891 = vmatprep.subr.bf16.mxu0 0
    %892 = vmatpush1.bf16.msra.mxu0 0
    %893 = vmatprep.subr.bf16.mxu0 0
    %894 = vmatpush1.bf16.msra.mxu0 0
    %895 = vmatprep.subr.bf16.mxu0 0
    %896 = vmatpush1.bf16.msra.mxu0 0
    %897 = vmatprep.subr.bf16.mxu0 0
    %898 = vmatpush1.bf16.msra.mxu0 0
    %899 = vmatprep.subr.bf16.mxu0 0
    %900 = vmatpush1.bf16.msra.mxu0 0
    %901 = vmatprep.subr.bf16.mxu0 0
    %902 = vmatpush1.bf16.msra.mxu0 0
    %903 = vmatprep.mubr.bf16.mxu0 0
    %904 = vmatmul.mubr.bf16.gmra.mrb[0].mxu0 %v799
    %v905 = vpop.f32.mrb[0].mxu0
    %v906 = vadd.f32 %v821, %v905
    %v907 = vpop.f32.mrb[0].mxu0
    %v908 = vpop.f32.mrb[0].mxu0
    %v909 = vpop.f32.mrb[0].mxu0
    %910 = vdwg.mxu0
    %911 = vst [vmem:[%s11] sm:$0xff] %v906
    // Predicated region
    $region66: #{dqn_forward.1} parent=1 // pred_check
      _
    $region67: #{dqn_forward.1} parent=1 // pred_check_branch
      %913 = sbr.rel (0) target = $region69
    $region68: #{dqn_forward.1} parent=1 // pred_region
      _
    $region69: #{dqn_forward.1} parent=1 // pred_fallthru
      _
    // Predicated region
    $region70: #{dqn_forward.1} parent=1 // pred_check
      _
    $region71: #{dqn_forward.1} parent=1 // pred_check_branch
      %915 = sbr.rel (0) target = $region73
    $region72: #{dqn_forward.1} parent=1 // pred_region
      _
    $region73: #{dqn_forward.1} parent=1 // pred_fallthru
      _
    %916 = vsyncpa [#allocation3], 1
    %917 = vsyncpa [#allocation5], 1
    %918 = vsyncpa [#allocation8], 1

</llo_original>
